<compile_context>
chip_gen: v5e
topology: v5e:2x2
jax: 0.10.0
libtpu: 0.0.40
codegen_flags: <defaults>
</compile_context>

<pallas_src>
import math

import jax
import jax.numpy as jnp
from jax.experimental import pallas as pl
from jax.experimental.pallas import tpu as pltpu


# -----------------------------------------------------------------------------
# helpers
# -----------------------------------------------------------------------------
def _round_up(x, m):
    return ((x + m - 1) // m) * m


def _full_spec(shape):
    """Whole-array block (for weights / tiny tensors); rank-1 grid index_map."""
    nd = len(shape)
    return pl.BlockSpec(tuple(shape), lambda i, _nd=nd: (0,) * _nd)


def _softplus(x):
    return jnp.maximum(x, 0.0) + jnp.log1p(jnp.exp(-jnp.abs(x)))


# -----------------------------------------------------------------------------
# Embedding linear kernel (tiny, whole-array)
# -----------------------------------------------------------------------------
def _linear_kernel(x_ref, w_ref, b_ref, o_ref):
    o_ref[...] = (
        jnp.dot(x_ref[...], w_ref[...], preferred_element_type=jnp.float32)
        + b_ref[...]
    )


def linear(x, w, b):
    out_shape = jax.ShapeDtypeStruct((x.shape[0], w.shape[1]), jnp.float32)
    return pl.pallas_call(
        _linear_kernel,
        grid=(1,),
        in_specs=[_full_spec(x.shape), _full_spec(w.shape), _full_spec(b.shape)],
        out_specs=_full_spec(out_shape.shape),
        out_shape=out_shape,
    )(x, w, b)


# -----------------------------------------------------------------------------
# Gaussian smearing kernel (hoisted: computed once, reused across layers)
# -----------------------------------------------------------------------------
def make_rbf_kernel(T, K, G, coeff):
    def kernel(d_ref, off_ref, o_ref):
        d = d_ref[...]                                    # (T, K)
        off = off_ref[...]                                # (1, G)
        diff = d[:, :, None] - off[None, :, :]            # (T, K, G)
        o_ref[...] = jnp.exp(coeff * diff * diff)
    return kernel


def gaussian_smearing(d_edge, offsets, coeff, tile):
    Npad, K = d_edge.shape
    G = offsets.shape[1]
    kernel = make_rbf_kernel(tile, K, G, coeff)
    return pl.pallas_call(
        kernel,
        grid=(Npad // tile,),
        in_specs=[pl.BlockSpec((tile, K), lambda i: (i, 0)),
                  pl.BlockSpec((1, G), lambda i: (0, 0))],
        out_specs=pl.BlockSpec((tile, K, G), lambda i: (i, 0, 0)),
        out_shape=jax.ShapeDtypeStruct((Npad, K, G), jnp.float32),
        compiler_params=pltpu.CompilerParams(
            dimension_semantics=("parallel",)),
    )(d_edge, offsets)


# -----------------------------------------------------------------------------
# Sparse (k-NN) EGNN layer kernel, tiled over destination nodes
# -----------------------------------------------------------------------------
def make_egnn_layer_kernel(T, K, H, G):
    """One EnBaseLayer on a tile of T destination nodes with K neighbors each."""

    def kernel(hd_ref, hs_ref, rbf_ref, msk_ref,
               w1d_ref, w1sr_ref, b1_ref, w2_ref, b2_ref,
               winf_ref, binf_ref, wn1_ref, bn1_ref, wn2_ref, bn2_ref,
               out_ref):
        hd = hd_ref[...]                                  # (T, H)
        hs = hs_ref[...].reshape(T * K, H)                # (T*K, H)
        rbf = rbf_ref[...].reshape(T * K, G)              # (T*K, G)
        msk = msk_ref[...]                                # (T, K)

        # edge MLP layer 1 on cat([h_dst, h_src, rbf]):
        #   h_dst projected once per node; [h_src | rbf] as one wide matmul.
        hd_p = jnp.dot(hd, w1d_ref[...], preferred_element_type=jnp.float32)   # (T, H)
        sr = jnp.concatenate([hs, rbf], axis=-1)                                # (T*K, H+G)
        sr_p = jnp.dot(sr, w1sr_ref[...], preferred_element_type=jnp.float32)   # (T*K, H)
        z1 = jnp.maximum(
            sr_p.reshape(T, K, H) + hd_p[:, None, :] + b1_ref[...], 0.0)        # (T, K, H)

        # edge MLP layer 2 (act_last=True)
        m = jnp.maximum(
            jnp.dot(z1.reshape(T * K, H), w2_ref[...],
                    preferred_element_type=jnp.float32) + b2_ref[...], 0.0)      # (T*K, H)

        # sigmoid edge gate
        gate = jax.nn.sigmoid(
            jnp.dot(m, winf_ref[...], preferred_element_type=jnp.float32)
            + binf_ref[...])                                                     # (T*K, 1)

        # aggregate gated messages over the K neighbors (invalid edges masked)
        msg = (m * gate).reshape(T, K, H) * msk[:, :, None]
        mi = jnp.sum(msg, axis=1)                                                # (T, H)

        # node MLP on cat([msg, h]) as one wide matmul; residual update
        xn = jnp.concatenate([mi, hd], axis=-1)                                  # (T, 2H)
        z = jnp.maximum(
            jnp.dot(xn, wn1_ref[...], preferred_element_type=jnp.float32)
            + bn1_ref[...], 0.0)
        dh = jnp.dot(z, wn2_ref[...], preferred_element_type=jnp.float32) + bn2_ref[...]
        out_ref[...] = hd + dh

    return kernel


def egnn_layer(h, h_src, rbf, edge_mask, lp, *, tile):
    Npad, H = h.shape
    K = h_src.shape[1]
    G = rbf.shape[2]
    kernel = make_egnn_layer_kernel(tile, K, H, G)

    weights = [lp['w1_dst'], lp['w1_sr'], lp['b1'], lp['w2'], lp['b2'],
               lp['winf'], lp['binf'], lp['wn1'], lp['bn1'], lp['wn2'], lp['bn2']]

    in_specs = [
        pl.BlockSpec((tile, H), lambda i: (i, 0)),          # h_dst tile
        pl.BlockSpec((tile, K, H), lambda i: (i, 0, 0)),    # gathered h_src
        pl.BlockSpec((tile, K, G), lambda i: (i, 0, 0)),    # precomputed RBF
        pl.BlockSpec((tile, K), lambda i: (i, 0)),          # edge validity mask
    ] + [_full_spec(w.shape) for w in weights]              # weights stay resident

    return pl.pallas_call(
        kernel,
        grid=(Npad // tile,),
        in_specs=in_specs,
        out_specs=pl.BlockSpec((tile, H), lambda i: (i, 0)),
        out_shape=jax.ShapeDtypeStruct((Npad, H), jnp.float32),
        compiler_params=pltpu.CompilerParams(
            dimension_semantics=("parallel",),               # dst tiles independent
            vmem_limit_bytes=64 * 1024 * 1024),              # safe on v5e/v6e/v7x
    )(h, h_src, rbf, edge_mask, *weights)


# -----------------------------------------------------------------------------
# Readout: per-graph scatter-sum + out_block + one-hot(output_kind-1) selection
# -----------------------------------------------------------------------------
def make_readout_kernel(N, B, H, OUT, log2):
    def kernel(h_ref, batch_ref, kind_ref, wo1_ref, bo1_ref, wo2_ref, bo2_ref,
               out_ref):
        h = h_ref[...]                                     # (N, H)
        batch = batch_ref[...]                             # (1, N) int32
        row = jax.lax.broadcasted_iota(jnp.int32, (B, N), 0)
        onehot = (batch == row).astype(jnp.float32)        # (B, N)
        pre = jnp.dot(onehot, h, preferred_element_type=jnp.float32)  # scatter-sum

        z = _softplus(
            jnp.dot(pre, wo1_ref[...], preferred_element_type=jnp.float32)
            + bo1_ref[...]) - log2                         # ShiftedSoftplus
        out3 = jnp.dot(z, wo2_ref[...], preferred_element_type=jnp.float32) + bo2_ref[...]

        kind = kind_ref[...]                               # (B, 1) int32
        col = jax.lax.broadcasted_iota(jnp.int32, (B, OUT), 1)
        km = ((kind - 1) == col).astype(jnp.float32)
        out_ref[...] = jnp.sum(out3 * km, axis=-1, keepdims=True)   # (B, 1)

    return kernel


def readout(h, batch, output_kind, params, num_graphs):
    N, H = h.shape
    B = num_graphs
    OUT = params['Wo2'].shape[1]
    kernel = make_readout_kernel(N, B, H, OUT, math.log(2.0))
    inputs = [h, batch.reshape(1, N).astype(jnp.int32),
              output_kind.reshape(B, 1).astype(jnp.int32),
              params['Wo1'], params['bo1'], params['Wo2'], params['bo2']]
    return pl.pallas_call(
        kernel,
        grid=(1,),
        in_specs=[_full_spec(x.shape) for x in inputs],
        out_specs=_full_spec((B, 1)),
        out_shape=jax.ShapeDtypeStruct((B, 1), jnp.float32),
    )(*inputs)


# -----------------------------------------------------------------------------
# Parameter init (deterministic, torch-Linear-style uniform)
# -----------------------------------------------------------------------------
def init_linear(key, fan_in, fan_out):
    k1, k2 = jax.random.split(key)
    bound = 1.0 / math.sqrt(fan_in)
    w = jax.random.uniform(k1, (fan_in, fan_out), jnp.float32, -bound, bound)
    b = jax.random.uniform(k2, (1, fan_out), jnp.float32, -bound, bound)
    return w, b


def init_params(key, protein_dim, ligand_dim, hidden, num_layers,
                num_r_gaussian, out_dim):
    keys = jax.random.split(key, 4 + num_layers)
    Wp, bp = init_linear(keys[0], protein_dim, hidden)
    Wl, bl = init_linear(keys[1], ligand_dim, hidden)
    Wo1, bo1 = init_linear(keys[2], hidden, hidden)
    Wo2, bo2 = init_linear(keys[3], hidden, out_dim)
    layers = []
    for i in range(num_layers):
        lk = jax.random.split(keys[4 + i], 5)
        W1, b1 = init_linear(lk[0], 2 * hidden + num_r_gaussian, hidden)
        W2, b2 = init_linear(lk[1], hidden, hidden)
        Winf, binf = init_linear(lk[2], hidden, 1)
        Wn1, bn1 = init_linear(lk[3], 2 * hidden, hidden)
        Wn2, bn2 = init_linear(lk[4], hidden, hidden)
        layers.append(dict(
            w1_dst=W1[:hidden],          # h_dst projection     (H, H)
            w1_sr=W1[hidden:],           # [h_src | rbf] proj   (H+G, H)
            b1=b1, w2=W2, b2=b2, winf=Winf, binf=binf,
            wn1=Wn1, bn1=bn1, wn2=Wn2, bn2=bn2))
    return dict(Wp=Wp, bp=bp, Wl=Wl, bl=bl, Wo1=Wo1, bo1=bo1, Wo2=Wo2, bo2=bo2,
                layers=layers)


# -----------------------------------------------------------------------------
# Forward pass
# -----------------------------------------------------------------------------
def prop_pred_forward(params, protein_pos, protein_feat, ligand_pos, ligand_feat,
                      batch_protein, batch_ligand, output_kind,
                      *, num_graphs, k, cutoff, num_r_gaussian, tile_n=128):
    H = params['Wp'].shape[1]

    # atom embeddings (Pallas linear kernels)
    h_protein = linear(protein_feat, params['Wp'], params['bp'])
    h_ligand = linear(ligand_feat, params['Wl'], params['bl'])

    # compose_context_prop sorts nodes by batch id; the sort is skipped because
    # the encoder is permutation-equivariant and the readout is a per-graph sum.
    h = jnp.concatenate([h_protein, h_ligand], axis=0)
    pos = jnp.concatenate([protein_pos, ligand_pos], axis=0)
    batch = jnp.concatenate([batch_protein, batch_ligand], axis=0).astype(jnp.int32)
    N = h.shape[0]

    # --- glue: kNN graph + per-edge distances (computed ONCE, reused by layers)
    # squared distances via the matmul identity (no (N,N,3) tensor, no epsilon)
    r2 = jnp.sum(pos * pos, axis=-1)
    d2 = jnp.maximum(r2[:, None] + r2[None, :] - 2.0 * (pos @ pos.T), 0.0)
    valid = (batch[:, None] == batch[None, :]) & (~jnp.eye(N, dtype=bool))
    masked_d2 = jnp.where(valid, d2, jnp.inf)
    neg_vals, nbr = jax.lax.top_k(-masked_d2, k)              # (N, k)
    edge_mask = (neg_vals > -jnp.inf).astype(jnp.float32)     # (N, k) valid edges
    d_edge = jnp.sqrt(jnp.take_along_axis(d2, nbr, axis=1))   # (N, k)

    # pad node count to a tile multiple (padded rows are masked / discarded)
    tile = min(tile_n, _round_up(N, 8))
    Npad = _round_up(N, tile)
    pad = Npad - N
    h_pad = jnp.pad(h, ((0, pad), (0, 0)))
    nbr_pad = jnp.pad(nbr, ((0, pad), (0, 0)))
    mask_pad = jnp.pad(edge_mask, ((0, pad), (0, 0)))
    d_pad = jnp.pad(d_edge, ((0, pad), (0, 0)))

    # GaussianSmearing(start=0, stop=cutoff, num_gaussians=num_r_gaussian)
    # hoisted: single Pallas kernel, result shared by all layers
    offsets = jnp.linspace(0.0, cutoff, num_r_gaussian,
                           dtype=jnp.float32).reshape(1, -1)
    delta = float(cutoff) / (num_r_gaussian - 1)
    coeff = -0.5 / (delta * delta)
    rbf = gaussian_smearing(d_pad, offsets, coeff, tile)      # (Npad, k, G)

    # EGNN layers (sparse k-NN form); neighbor gather is JAX glue per layer
    for lp in params['layers']:
        h_src = h_pad[nbr_pad]                                # (Npad, k, H)
        h_pad = egnn_layer(h_pad, h_src, rbf, mask_pad, lp, tile=tile)

    h_out = h_pad[:N]

    # per-graph scatter-sum + out_block + one-hot(output_kind-1) selection
    return readout(h_out, batch, output_kind, params, num_graphs)


# -----------------------------------------------------------------------------
# Demo
# -----------------------------------------------------------------------------
if __name__ == "__main__":
    key = jax.random.PRNGKey(0)
    k1, k2, k3, k4, kw = jax.random.split(key, 5)

    Np, Nl = 20, 12                 # protein / ligand atom counts (total N = 32)
    PROTEIN_DIM, LIGAND_DIM = 27, 13
    HIDDEN = 32                     # config.hidden_channels / encoder hidden_dim
    NUM_LAYERS = 2                  # encoder num_layers
    NUM_R_GAUSSIAN = 16
    KNN = 8
    CUTOFF = 10.0
    OUT_DIM = 3
    NUM_GRAPHS = 2

    protein_pos = jax.random.normal(k1, (Np, 3), jnp.float32) * 3.0
    protein_feat = jax.random.normal(k2, (Np, PROTEIN_DIM), jnp.float32)
    ligand_pos = jax.random.normal(k3, (Nl, 3), jnp.float32) * 3.0
    ligand_feat = jax.random.normal(k4, (Nl, LIGAND_DIM), jnp.float32)
    batch_protein = jnp.array([0] * 10 + [1] * 10, dtype=jnp.int32)
    batch_ligand = jnp.array([0] * 6 + [1] * 6, dtype=jnp.int32)
    output_kind = jnp.array([1, 3], dtype=jnp.int32)   # values in {1..output_dim}

    params = init_params(kw, PROTEIN_DIM, LIGAND_DIM, HIDDEN, NUM_LAYERS,
                         NUM_R_GAUSSIAN, OUT_DIM)

    # tile_n=16 -> 2 destination-node tiles, exercising the pipelined grid
    out = prop_pred_forward(params, protein_pos, protein_feat, ligand_pos,
                            ligand_feat, batch_protein, batch_ligand,
                            output_kind, num_graphs=NUM_GRAPHS, k=KNN,
                            cutoff=CUTOFF, num_r_gaussian=NUM_R_GAUSSIAN,
                            tile_n=16)
    jax.block_until_ready(out)
    assert out.shape == (NUM_GRAPHS, 1) and out.dtype == jnp.float32
    print("KERNEL_OK")
</pallas_src>

<mosaic_0001>
module attributes {stable_mosaic.version = 11 : i64} {
  func.func @_linear_kernel(%arg0: i32, %arg1: memref<20x27xf32, #tpu.memory_space<vmem>>, %arg2: memref<27x32xf32, #tpu.memory_space<vmem>>, %arg3: memref<1x32xf32, #tpu.memory_space<vmem>>, %arg4: memref<20x32xf32, #tpu.memory_space<vmem>>) attributes {dimension_semantics = [#tpu.dimension_semantics<arbitrary>], iteration_bounds = array<i64: 1>, scalar_prefetch = 0 : i64, scratch_operands = 0 : i64, tpu.core_type = #tpu.core_type<tc>, window_params = [{pipeline_mode = #tpu.pipeline_mode<synchronous>, transform_indices = @transform_0, window_bounds = array<i64: 20, 27>}, {pipeline_mode = #tpu.pipeline_mode<synchronous>, transform_indices = @transform_1, window_bounds = array<i64: 27, 32>}, {pipeline_mode = #tpu.pipeline_mode<synchronous>, transform_indices = @transform_2, window_bounds = array<i64: 1, 32>}, {pipeline_mode = #tpu.pipeline_mode<synchronous>, transform_indices = @transform_3, window_bounds = array<i64: 20, 32>}]} {
    %c0 = arith.constant 0 : index
    %c0_0 = arith.constant 0 : index
    %0 = vector.load %arg1[%c0, %c0_0] : memref<20x27xf32, #tpu.memory_space<vmem>>, vector<20x27xf32>
    %c0_1 = arith.constant 0 : index
    %c0_2 = arith.constant 0 : index
    %1 = vector.load %arg2[%c0_1, %c0_2] : memref<27x32xf32, #tpu.memory_space<vmem>>, vector<27x32xf32>
    %cst = arith.constant dense<0.000000e+00> : vector<20x32xf32>
    %2 = tpu.matmul %0, %1, %cst {dimension_numbers = #tpu.dot_dimension_numbers<[1], [0], [0], [1], [0, 0, 1, 1], [], []>} : vector<20x27xf32>, vector<27x32xf32>, vector<20x32xf32> -> vector<20x32xf32>
    %c0_3 = arith.constant 0 : index
    %c0_4 = arith.constant 0 : index
    %3 = vector.load %arg3[%c0_3, %c0_4] : memref<1x32xf32, #tpu.memory_space<vmem>>, vector<1x32xf32>
    %4 = vector.broadcast %3 : vector<1x32xf32> to vector<20x32xf32>
    %5 = arith.addf %2, %4 : vector<20x32xf32>
    %c0_5 = arith.constant 0 : index
    %c0_6 = arith.constant 0 : index
    %6 = vector.load %arg4[%c0_5, %c0_6] : memref<20x32xf32, #tpu.memory_space<vmem>>, vector<20x32xf32>
    tpu.vector_store %arg4[%c0_5, %c0_6], %5 {strides = array<i32>} : memref<20x32xf32, #tpu.memory_space<vmem>>, vector<20x32xf32>,
    return
  }
  func.func @transform_0(%arg0: i32) -> (i32, i32) {
    %c0_i32 = arith.constant 0 : i32
    %c0_i32_0 = arith.constant 0 : i32
    %c0_i32_1 = arith.constant 0 : i32
    return %c0_i32, %c0_i32_0 : i32, i32
  }
  func.func @transform_1(%arg0: i32) -> (i32, i32) {
    %c0_i32 = arith.constant 0 : i32
    %c0_i32_0 = arith.constant 0 : i32
    %c0_i32_1 = arith.constant 0 : i32
    return %c0_i32, %c0_i32_0 : i32, i32
  }
  func.func @transform_2(%arg0: i32) -> (i32, i32) {
    %c0_i32 = arith.constant 0 : i32
    %c0_i32_0 = arith.constant 0 : i32
    %c0_i32_1 = arith.constant 0 : i32
    return %c0_i32, %c0_i32_0 : i32, i32
  }
  func.func @transform_3(%arg0: i32) -> (i32, i32) {
    %c0_i32 = arith.constant 0 : i32
    %c0_i32_0 = arith.constant 0 : i32
    %c0_i32_1 = arith.constant 0 : i32
    return %c0_i32, %c0_i32_0 : i32, i32
  }
}

</mosaic_0001>

<llo_original>
// kernel: tpu_custom_call.1
$region0: #{tpu_custom_call.1}
  #allocation0 [shape = 'u32[]', space=smem, size = 0x4, offset = 0x4, fixed_abs, tag = 'smem constant byte address 0x4 - core index']
  #allocation1 [shape = 'u32[72,128]{1,0:T(1,128)}', space=vmem, size = 0x9000, scoped, tag = 'internal scratch']
  %s0 = inlined_call_operand.hbm [shape: f32[20,27], index: 0, kind: input, shape index: {}]
  %s1 = inlined_call_operand.hbm [shape: f32[27,32], index: 1, kind: input, shape index: {}]
  %s2 = inlined_call_operand.vmem [shape: f32[1,32], index: 2, kind: input, shape index: {}]
  %s3 = inlined_call_operand.hbm [shape: f32[20,32], index: 3, kind: output, shape index: {}]
  %s4 = sld [smem:[#allocation0]]
  $region30: #{tpu_custom_call.1} parent=0
    _
  %s6 = ssub.s32 1, %s4
  %s7 = scalar_select 0, %s6, %s4
  $region1: #{tpu_custom_call.1} parent=0
    #allocation2 [shape = 'u8[12288]{0}', space=vmem, size = 0x3000, scoped, tag = 'input window, operand 0, single buffered']
    #allocation3 [shape = 's32[1]{0}', space=sflag, size = 0x4, scoped, tag = 'scoped memory for tpu_custom_call.1']
    #allocation4 [shape = 's32[1]{0}', space=sflag, size = 0x4, scoped, tag = 'scoped memory for tpu_custom_call.1']
    #allocation5 [shape = 'u8[16384]{0}', space=vmem, size = 0x4000, scoped, tag = 'input window, operand 1, single buffered']
    #allocation6 [shape = 's32[1]{0}', space=sflag, size = 0x4, scoped, tag = 'scoped memory for tpu_custom_call.1']
    #allocation7 [shape = 'u8[12288]{0}', space=vmem, size = 0x3000, scoped, tag = 'output window, operand 0, single buffered']
    %8 = vsyncpa [#allocation3], 0
    %9 = vsyncpa [#allocation6], 0
    %10 = vsyncpa [#allocation4], 0
    // Predicated region
    $region2: #{tpu_custom_call.1} parent=1 // pred_check
      _
    $region3: #{tpu_custom_call.1} parent=1 // pred_check_branch
      %12 = sbr.rel (0) target = $region5
    $region4: #{tpu_custom_call.1} parent=1 // pred_region
      %14 = vsyncadd [#allocation3], 0
      %s15 = sshll.u32 %s0, 4
      %s16 = int_to_ptr.hbm [resolvable:$true] %s15
      %s17 = sshll.u32 [#allocation2], 4
      %s18 = int_to_ptr.vmem [resolvable:$true] %s17
      %23 = dma.hbm_to_vmem [thread:$0]  %s16, 384, %s18, [#allocation3], 128, 128, 8
    $region5: #{tpu_custom_call.1} parent=1 // pred_fallthru
      _
    // Predicated region
    $region6: #{tpu_custom_call.1} parent=1 // pred_check
      _
    $region7: #{tpu_custom_call.1} parent=1 // pred_check_branch
      %25 = sbr.rel (0) target = $region9
    $region8: #{tpu_custom_call.1} parent=1 // pred_region
      %27 = vsyncadd [#allocation6], 0
      %s28 = sshll.u32 %s1, 4
      %s29 = int_to_ptr.hbm [resolvable:$true] %s28
      %s30 = sshll.u32 [#allocation5], 4
      %s31 = int_to_ptr.vmem [resolvable:$true] %s30
      %36 = dma.hbm_to_vmem [thread:$0]  %s29, 512, %s31, [#allocation6], 128, 128, 8
    $region9: #{tpu_custom_call.1} parent=1 // pred_fallthru
      _
    // Predicated region
    $region10: #{tpu_custom_call.1} parent=1 // pred_check
      _
    $region11: #{tpu_custom_call.1} parent=1 // pred_check_branch
      %38 = sbr.rel (0) target = $region13
    $region12: #{tpu_custom_call.1} parent=1 // pred_region
      _
    $region13: #{tpu_custom_call.1} parent=1 // pred_fallthru
      _
    // Predicated region
    $region14: #{tpu_custom_call.1} parent=1 // pred_check
      _
    $region15: #{tpu_custom_call.1} parent=1 // pred_check_branch
      %40 = sbr.rel (0) target = $region17
    $region16: #{tpu_custom_call.1} parent=1 // pred_region
      %42 = dma.done [#allocation3], 384
    $region17: #{tpu_custom_call.1} parent=1 // pred_fallthru
      _
    // Predicated region
    $region18: #{tpu_custom_call.1} parent=1 // pred_check
      _
    $region19: #{tpu_custom_call.1} parent=1 // pred_check_branch
      %44 = sbr.rel (0) target = $region21
    $region20: #{tpu_custom_call.1} parent=1 // pred_region
      %46 = dma.done [#allocation6], 512
    $region21: #{tpu_custom_call.1} parent=1 // pred_fallthru
      _
    %v47 = vld [vmem:[#allocation2] sm:$0xff]
    %v48 = vld [vmem:[#allocation2 + $0x8] sm:$0xff]
    %v49 = vld [vmem:[#allocation2 + $0x10] sm:$0xf]
    %v50 = vld [vmem:[#allocation5] sm:$0xff]
    %v51 = vld [vmem:[#allocation5 + $0x8] sm:$0xff]
    %v52 = vld [vmem:[#allocation5 + $0x10] sm:$0xff]
    %v53 = vld [vmem:[#allocation5 + $0x18] sm:$0x7]
    %v54 = vld [vmem:[%s2] sm:$0x1]
    %v56 = vperm.slane %v54, 0
    %vm58 = vcmask 220160
    %v60 = vsel %vm58, %v47, 0
    %v63 = vsel %vm58, %v48, 0
    %v66 = vsel %vm58, %v49, 0
    %vm68 = vcmask 1042432
    %v70 = vsel %vm68, %v53, 0
    %72 = vmatpush.msra.mxu0 0.0
    %73 = vmatpush.msra.mxu0 0.0
    %74 = vmatpush.msra.mxu0 0.0
    %75 = vmatpush.msra.mxu0 0.0
    %76 = vmatpush.msra.mxu0 0.0
    %77 = vmatpush.msra.mxu0 0.0
    %78 = vmatpush.msra.mxu0 0.0
    %79 = vmatpush.msra.mxu0 0.0
    %80 = vmatpush.msra.mxu0 0.0
    %81 = vmatpush.msra.mxu0 0.0
    %82 = vmatpush.msra.mxu0 0.0
    %83 = vmatpush.msra.mxu0 0.0
    %84 = vmatpush.msra.mxu0 %v70
    %85 = vmatpush.msra.mxu0 %v52
    %86 = vmatpush.msra.mxu0 %v51
    %87 = vmatpush.msra.mxu0 %v50
    %88 = vmatmul.f32.gmra.mxu0 %v60
    %v89 = vpop.f32.mrf.mxu0
    %v90 = vadd.f32 %v56, %v89
    %91 = vmatmul.f32.gmra.mxu0 %v63
    %v92 = vpop.f32.mrf.mxu0
    %v93 = vadd.f32 %v56, %v92
    %94 = vmatmul.f32.gmra.mxu0 %v66
    %v95 = vpop.f32.mrf.mxu0
    %v96 = vadd.f32 %v56, %v95
    %97 = vdwg.mxu0
    %vm98 = vcmask 261120
    %99 = vst.msk [vmem:[#allocation7] sm:$0xff] %vm98, %v90
    %100 = vst.msk [vmem:[#allocation7 + $0x8] sm:$0xff] %vm98, %v93
    %vm101 = vcmask 257024
    %102 = vst.msk [vmem:[#allocation7 + $0x10] sm:$0xf] %vm101, %v96
    // Predicated region
    $region22: #{tpu_custom_call.1} parent=1 // pred_check
      _
    $region23: #{tpu_custom_call.1} parent=1 // pred_check_branch
      %104 = sbr.rel (0) target = $region25
    $region24: #{tpu_custom_call.1} parent=1 // pred_region
      %106 = vsyncadd [#allocation4], 0
      %s107 = sshll.u32 [#allocation7], 4
      %s108 = int_to_ptr.vmem [resolvable:$true] %s107
      %s109 = sshll.u32 %s3, 4
      %s110 = int_to_ptr.hbm [resolvable:$true] %s109
      %115 = dma.vmem_to_hbm [thread:$0]  %s108, 384, %s110, [#allocation4], 128, 128, 8
    $region25: #{tpu_custom_call.1} parent=1 // pred_fallthru
      _
    // Predicated region
    $region26: #{tpu_custom_call.1} parent=1 // pred_check
      _
    $region27: #{tpu_custom_call.1} parent=1 // pred_check_branch
      %117 = sbr.rel (0) target = $region29
    $region28: #{tpu_custom_call.1} parent=1 // pred_region
      %119 = dma.done [#allocation4], 384
    $region29: #{tpu_custom_call.1} parent=1 // pred_fallthru
      _
    %120 = vsyncpa [#allocation3], 1
    %121 = vsyncpa [#allocation6], 1
    %122 = vsyncpa [#allocation4], 1

</llo_original>
